<compile_context>
chip_gen: v5e
topology: v5e:2x2
jax: 0.10.0
libtpu: 0.0.40
codegen_flags: <defaults>
</compile_context>

<pallas_src>
import functools

import jax
import jax.numpy as jnp
from jax.experimental import pallas as pl
from jax.experimental.pallas import tpu as pltpu


@functools.partial(jax.jit, static_argnames=("alpha",))
def combined_loss(output, target, alpha=0.5):
    """output, target: (N, C, H, W) float arrays. Returns scalar f32 loss."""
    N, C, H, W = output.shape
    B = N * C
    alpha = float(alpha)
    inv_count = 1.0 / float(B * H * W)   # both means are over N*C*H*W elements

    # Flatten channels into the plane axis (depthwise conv: same Sobel per channel)
    # and zero-pad H/W by 1 (conv padding=1).  Glue only; all math runs in the kernel.
    op = jnp.pad(output.astype(jnp.float32).reshape(B, H, W),
                 ((0, 0), (1, 1), (1, 1)))
    tp = jnp.pad(target.astype(jnp.float32).reshape(B, H, W),
                 ((0, 0), (1, 1), (1, 1)))

    def kernel(op_ref, tp_ref, o_ref, acc_ref):
        b = pl.program_id(0)

        @pl.when(b == 0)
        def _():
            acc_ref[0] = 0.0

        o_pad = op_ref[...]          # (H+2, W+2), zero-padded plane
        t_pad = tp_ref[...]

        # L1 term: padding is zero in both tensors, so summing |o - t| over the padded
        # plane equals the sum over the valid H x W region.
        l1_sum = jnp.sum(jnp.abs(o_pad - t_pad))

        def sobel_mag(x):
            # 3x3 cross-correlation taps (PyTorch conv2d does NOT flip the kernel).
            s00 = x[0:H, 0:W]
            s01 = x[0:H, 1:W + 1]
            s02 = x[0:H, 2:W + 2]
            s10 = x[1:H + 1, 0:W]
            s12 = x[1:H + 1, 2:W + 2]
            s20 = x[2:H + 2, 0:W]
            s21 = x[2:H + 2, 1:W + 1]
            s22 = x[2:H + 2, 2:W + 2]
            gx = (s02 - s00) + 2.0 * (s12 - s10) + (s22 - s20)   # sobel_x
            gy = (s20 - s00) + 2.0 * (s21 - s01) + (s22 - s02)   # sobel_y
            return jnp.sqrt(gx * gx + gy * gy + 1e-6)

        g_sum = jnp.sum(jnp.abs(sobel_mag(o_pad) - sobel_mag(t_pad)))

        acc_ref[0] += l1_sum + alpha * g_sum

        @pl.when(b == pl.num_programs(0) - 1)
        def _():
            o_ref[0, 0] = acc_ref[0] * inv_count

    out = pl.pallas_call(
        kernel,
        out_shape=jax.ShapeDtypeStruct((1, 1), jnp.float32),
        grid=(B,),
        in_specs=[
            pl.BlockSpec((None, H + 2, W + 2), lambda b: (b, 0, 0)),
            pl.BlockSpec((None, H + 2, W + 2), lambda b: (b, 0, 0)),
        ],
        out_specs=pl.BlockSpec(memory_space=pltpu.MemorySpace.SMEM),
        scratch_shapes=[pltpu.SMEM((1,), jnp.float32)],
        compiler_params=pltpu.CompilerParams(
            dimension_semantics=("arbitrary",)),   # scalar accumulator across the grid
    )(op, tp)
    return out[0, 0]


def _reference_combined_loss(output, target, alpha):
    # Pure-JAX reference mirroring the PyTorch module, for a correctness check.
    def grad_mag(x):
        xp = jnp.pad(x, ((0, 0), (0, 0), (1, 1), (1, 1)))
        H, W = x.shape[2], x.shape[3]

        def sl(dy, dx):
            return xp[:, :, dy:dy + H, dx:dx + W]

        gx = (sl(0, 2) - sl(0, 0)) + 2.0 * (sl(1, 2) - sl(1, 0)) + (sl(2, 2) - sl(2, 0))
        gy = (sl(2, 0) - sl(0, 0)) + 2.0 * (sl(2, 1) - sl(0, 1)) + (sl(2, 2) - sl(0, 2))
        return jnp.sqrt(gx * gx + gy * gy + 1e-6)

    l1 = jnp.mean(jnp.abs(output - target))
    gl = jnp.mean(jnp.abs(grad_mag(output) - grad_mag(target)))
    return l1 + alpha * gl


if __name__ == "__main__":
    key = jax.random.PRNGKey(0)
    k_out, k_tgt = jax.random.split(key)

    # NCHW inputs with 3 channels (the module's Sobel filter is repeated for 3 groups).
    output_img = jax.random.uniform(k_out, (2, 3, 16, 16), jnp.float32)
    target_img = jax.random.uniform(k_tgt, (2, 3, 16, 16), jnp.float32)
    alpha = 0.5

    loss = combined_loss(output_img, target_img, alpha=alpha)
    jax.block_until_ready(loss)

    ref = _reference_combined_loss(output_img, target_img, alpha)
    assert loss.shape == () and bool(jnp.isfinite(loss))
    assert jnp.allclose(loss, ref, rtol=1e-4, atol=1e-5), (loss, ref)
    print("KERNEL_OK")
</pallas_src>

<mosaic_0001>
module attributes {stable_mosaic.version = 11 : i64} {
  func.func @kernel(%arg0: i32, %arg1: memref<1x18x18xf32, #tpu.memory_space<vmem>>, %arg2: memref<1x18x18xf32, #tpu.memory_space<vmem>>, %arg3: memref<1x1xf32, #tpu.memory_space<smem>>, %arg4: memref<1xf32, #tpu.memory_space<smem>>) attributes {dimension_semantics = [#tpu.dimension_semantics<arbitrary>], iteration_bounds = array<i64: 6>, scalar_prefetch = 0 : i64, scratch_operands = 1 : i64, tpu.core_type = #tpu.core_type<tc>, window_params = [{transform_indices = @transform_0, window_bounds = array<i64: 1, 18, 18>}, {transform_indices = @transform_1, window_bounds = array<i64: 1, 18, 18>}, {transform_indices = @transform_2, window_bounds = array<i64: 1, 1>}]} {
    %c0_i32 = arith.constant 0 : i32
    %0 = arith.cmpi eq, %arg0, %c0_i32 : i32
    %1 = arith.extui %0 : i1 to i32
    %c0_i32_0 = arith.constant 0 : i32
    %2 = arith.cmpi ne, %1, %c0_i32_0 : i32
    scf.if %2 {
      %cst_17 = arith.constant 0.000000e+00 : f32
      %c0_18 = arith.constant 0 : index
      %83 = memref.load %arg4[%c0_18] : memref<1xf32, #tpu.memory_space<smem>>
      memref.store %cst_17, %arg4[%c0_18] : memref<1xf32, #tpu.memory_space<smem>>
    } else {
    }
    %c0 = arith.constant 0 : index
    %c0_1 = arith.constant 0 : index
    %c0_2 = arith.constant 0 : index
    %3 = vector.load %arg1[%c0, %c0_1, %c0_2] : memref<1x18x18xf32, #tpu.memory_space<vmem>>, vector<1x18x18xf32>
    %4 = vector.shape_cast %3 : vector<1x18x18xf32> to vector<18x18xf32>
    %c0_3 = arith.constant 0 : index
    %c0_4 = arith.constant 0 : index
    %c0_5 = arith.constant 0 : index
    %5 = vector.load %arg2[%c0_3, %c0_4, %c0_5] : memref<1x18x18xf32, #tpu.memory_space<vmem>>, vector<1x18x18xf32>
    %6 = vector.shape_cast %5 : vector<1x18x18xf32> to vector<18x18xf32>
    %7 = arith.subf %4, %6 : vector<18x18xf32>
    %8 = math.absf %7 : vector<18x18xf32>
    %9 = vector.shape_cast %8 : vector<18x18xf32> to vector<1x18x18xf32>
    %cst = arith.constant dense<0.000000e+00> : vector<1xf32>
    %10 = vector.multi_reduction <add>, %9, %cst [1, 2] : vector<1x18x18xf32> to vector<1xf32>
    %11 = vector.shape_cast %10 : vector<1xf32> to vector<1x1x1xf32>
    %12 = vector.extract %11[0, 0, 0] : f32 from vector<1x1x1xf32>
    %13 = vector.extract_strided_slice %4 {offsets = [0, 0], sizes = [16, 16], strides = [1, 1]} : vector<18x18xf32> to vector<16x16xf32>
    %14 = vector.extract_strided_slice %4 {offsets = [0, 1], sizes = [16, 16], strides = [1, 1]} : vector<18x18xf32> to vector<16x16xf32>
    %15 = vector.extract_strided_slice %4 {offsets = [0, 2], sizes = [16, 16], strides = [1, 1]} : vector<18x18xf32> to vector<16x16xf32>
    %16 = vector.extract_strided_slice %4 {offsets = [1, 0], sizes = [16, 16], strides = [1, 1]} : vector<18x18xf32> to vector<16x16xf32>
    %17 = vector.extract_strided_slice %4 {offsets = [1, 2], sizes = [16, 16], strides = [1, 1]} : vector<18x18xf32> to vector<16x16xf32>
    %18 = vector.extract_strided_slice %4 {offsets = [2, 0], sizes = [16, 16], strides = [1, 1]} : vector<18x18xf32> to vector<16x16xf32>
    %19 = vector.extract_strided_slice %4 {offsets = [2, 1], sizes = [16, 16], strides = [1, 1]} : vector<18x18xf32> to vector<16x16xf32>
    %20 = vector.extract_strided_slice %4 {offsets = [2, 2], sizes = [16, 16], strides = [1, 1]} : vector<18x18xf32> to vector<16x16xf32>
    %21 = arith.subf %15, %13 : vector<16x16xf32>
    %22 = arith.subf %17, %16 : vector<16x16xf32>
    %cst_6 = arith.constant 2.000000e+00 : f32
    %23 = vector.broadcast %cst_6 : f32 to vector<16x16xf32>
    %24 = arith.mulf %23, %22 : vector<16x16xf32>
    %25 = arith.addf %21, %24 : vector<16x16xf32>
    %26 = arith.subf %20, %18 : vector<16x16xf32>
    %27 = arith.addf %25, %26 : vector<16x16xf32>
    %28 = arith.subf %18, %13 : vector<16x16xf32>
    %29 = arith.subf %19, %14 : vector<16x16xf32>
    %cst_7 = arith.constant 2.000000e+00 : f32
    %30 = vector.broadcast %cst_7 : f32 to vector<16x16xf32>
    %31 = arith.mulf %30, %29 : vector<16x16xf32>
    %32 = arith.addf %28, %31 : vector<16x16xf32>
    %33 = arith.subf %20, %15 : vector<16x16xf32>
    %34 = arith.addf %32, %33 : vector<16x16xf32>
    %35 = arith.mulf %27, %27 : vector<16x16xf32>
    %36 = arith.mulf %34, %34 : vector<16x16xf32>
    %37 = arith.addf %35, %36 : vector<16x16xf32>
    %cst_8 = arith.constant 9.99999997E-7 : f32
    %38 = vector.broadcast %cst_8 : f32 to vector<16x16xf32>
    %39 = arith.addf %37, %38 : vector<16x16xf32>
    %40 = math.sqrt %39 : vector<16x16xf32>
    %41 = vector.extract_strided_slice %6 {offsets = [0, 0], sizes = [16, 16], strides = [1, 1]} : vector<18x18xf32> to vector<16x16xf32>
    %42 = vector.extract_strided_slice %6 {offsets = [0, 1], sizes = [16, 16], strides = [1, 1]} : vector<18x18xf32> to vector<16x16xf32>
    %43 = vector.extract_strided_slice %6 {offsets = [0, 2], sizes = [16, 16], strides = [1, 1]} : vector<18x18xf32> to vector<16x16xf32>
    %44 = vector.extract_strided_slice %6 {offsets = [1, 0], sizes = [16, 16], strides = [1, 1]} : vector<18x18xf32> to vector<16x16xf32>
    %45 = vector.extract_strided_slice %6 {offsets = [1, 2], sizes = [16, 16], strides = [1, 1]} : vector<18x18xf32> to vector<16x16xf32>
    %46 = vector.extract_strided_slice %6 {offsets = [2, 0], sizes = [16, 16], strides = [1, 1]} : vector<18x18xf32> to vector<16x16xf32>
    %47 = vector.extract_strided_slice %6 {offsets = [2, 1], sizes = [16, 16], strides = [1, 1]} : vector<18x18xf32> to vector<16x16xf32>
    %48 = vector.extract_strided_slice %6 {offsets = [2, 2], sizes = [16, 16], strides = [1, 1]} : vector<18x18xf32> to vector<16x16xf32>
    %49 = arith.subf %43, %41 : vector<16x16xf32>
    %50 = arith.subf %45, %44 : vector<16x16xf32>
    %cst_9 = arith.constant 2.000000e+00 : f32
    %51 = vector.broadcast %cst_9 : f32 to vector<16x16xf32>
    %52 = arith.mulf %51, %50 : vector<16x16xf32>
    %53 = arith.addf %49, %52 : vector<16x16xf32>
    %54 = arith.subf %48, %46 : vector<16x16xf32>
    %55 = arith.addf %53, %54 : vector<16x16xf32>
    %56 = arith.subf %46, %41 : vector<16x16xf32>
    %57 = arith.subf %47, %42 : vector<16x16xf32>
    %cst_10 = arith.constant 2.000000e+00 : f32
    %58 = vector.broadcast %cst_10 : f32 to vector<16x16xf32>
    %59 = arith.mulf %58, %57 : vector<16x16xf32>
    %60 = arith.addf %56, %59 : vector<16x16xf32>
    %61 = arith.subf %48, %43 : vector<16x16xf32>
    %62 = arith.addf %60, %61 : vector<16x16xf32>
    %63 = arith.mulf %55, %55 : vector<16x16xf32>
    %64 = arith.mulf %62, %62 : vector<16x16xf32>
    %65 = arith.addf %63, %64 : vector<16x16xf32>
    %cst_11 = arith.constant 9.99999997E-7 : f32
    %66 = vector.broadcast %cst_11 : f32 to vector<16x16xf32>
    %67 = arith.addf %65, %66 : vector<16x16xf32>
    %68 = math.sqrt %67 : vector<16x16xf32>
    %69 = arith.subf %40, %68 : vector<16x16xf32>
    %70 = math.absf %69 : vector<16x16xf32>
    %71 = vector.shape_cast %70 : vector<16x16xf32> to vector<1x16x16xf32>
    %cst_12 = arith.constant dense<0.000000e+00> : vector<1xf32>
    %72 = vector.multi_reduction <add>, %71, %cst_12 [1, 2] : vector<1x16x16xf32> to vector<1xf32>
    %73 = vector.shape_cast %72 : vector<1xf32> to vector<1x1x1xf32>
    %74 = vector.extract %73[0, 0, 0] : f32 from vector<1x1x1xf32>
    %c0_13 = arith.constant 0 : index
    %75 = memref.load %arg4[%c0_13] : memref<1xf32, #tpu.memory_space<smem>>
    %cst_14 = arith.constant 5.000000e-01 : f32
    %76 = arith.mulf %cst_14, %74 : f32
    %77 = arith.addf %12, %76 : f32
    %78 = arith.addf %75, %77 : f32
    %c0_15 = arith.constant 0 : index
    %79 = memref.load %arg4[%c0_15] : memref<1xf32, #tpu.memory_space<smem>>
    memref.store %78, %arg4[%c0_15] : memref<1xf32, #tpu.memory_space<smem>>
    %c5_i32 = arith.constant 5 : i32
    %80 = arith.cmpi eq, %arg0, %c5_i32 : i32
    %81 = arith.extui %80 : i1 to i32
    %c0_i32_16 = arith.constant 0 : i32
    %82 = arith.cmpi ne, %81, %c0_i32_16 : i32
    scf.if %82 {
      %c0_17 = arith.constant 0 : index
      %83 = memref.load %arg4[%c0_17] : memref<1xf32, #tpu.memory_space<smem>>
      %cst_18 = arith.constant 6.51041686E-4 : f32
      %84 = arith.mulf %83, %cst_18 : f32
      %c0_19 = arith.constant 0 : index
      %c0_20 = arith.constant 0 : index
      %85 = memref.load %arg3[%c0_19, %c0_20] : memref<1x1xf32, #tpu.memory_space<smem>>
      memref.store %84, %arg3[%c0_19, %c0_20] : memref<1x1xf32, #tpu.memory_space<smem>>
    } else {
    }
    return
  }
  func.func @transform_0(%arg0: i32) -> (i32, i32, i32) {
    %c0_i32 = arith.constant 0 : i32
    %c0_i32_0 = arith.constant 0 : i32
    %c0_i32_1 = arith.constant 0 : i32
    return %arg0, %c0_i32, %c0_i32_0 : i32, i32, i32
  }
  func.func @transform_1(%arg0: i32) -> (i32, i32, i32) {
    %c0_i32 = arith.constant 0 : i32
    %c0_i32_0 = arith.constant 0 : i32
    %c0_i32_1 = arith.constant 0 : i32
    return %arg0, %c0_i32, %c0_i32_0 : i32, i32, i32
  }
  func.func @transform_2(%arg0: i32) -> (i32, i32) {
    %c0_i32 = arith.constant 0 : i32
    %c0_i32_0 = arith.constant 0 : i32
    %c0_i32_1 = arith.constant 0 : i32
    return %c0_i32, %c0_i32_0 : i32, i32
  }
}

</mosaic_0001>

<llo_original>
// kernel: combined_loss.1
$region0: #{combined_loss.1}
  #allocation0 [shape = 'u32[]', space=smem, size = 0x4, offset = 0x4, fixed_abs, tag = 'smem constant byte address 0x4 - core index']
  #allocation1 [shape = 'u32[72,128]{1,0:T(1,128)}', space=vmem, size = 0x9000, scoped, tag = 'internal scratch']
  #allocation2 [shape = 'f32[1]{0:T(128)}', space=smem, size = 0x200, scoped, tag = 'scratch operand']
  %s0 = inlined_call_operand.vmem [shape: f32[6,18,18], index: 0, kind: input, shape index: {}]
  %s1 = inlined_call_operand.vmem [shape: f32[6,18,18], index: 1, kind: input, shape index: {}]
  %s2 = inlined_call_operand.hbm [shape: f32[1,1], index: 2, kind: output, shape index: {}]
  %s3 = sld [smem:[#allocation0]]
  $region49: #{combined_loss.1} parent=0
    _
  %s5 = ssub.s32 1, %s3
  %s6 = scalar_select 0, %s5, %s3
  $region1: #{combined_loss.1} parent=0
    #allocation3 [shape = 'u8[512]{0}', space=smem, size = 0x200, scoped, tag = 'output window, operand 0, single buffered']
    #allocation4 [shape = 's32[2]{0}', space=sflag, size = 0x8, scoped, tag = 'scoped memory for combined_loss.1']
    %7 = vsyncpa [#allocation4], 0
    loop: start=0, step=1, limit=8
    $region2: #{combined_loss.1} parent=1 // loop_pre_header
      _
    $region3: #{combined_loss.1} parent=1 // loop_header
      %s9 = sphi 0, %s13
      %p10 = scmp.ge.s32.totalorder %s9, 8
      %s19 = sphi 0, %s21
      %s22 = sphi 0, %s19
      %s23 = sphi 0, %s22
      %s39 = sphi 0, %s23
      %s45 = sphi 0, %s47
      %s48 = sphi 0, %s45
      %s49 = sphi 0, %s48
      %s65 = sphi 0, %s49
      %s69 = sphi 0, %s69
      %s71 = sphi 0, %s69
      %s72 = sphi 0, %s71
      %s86 = sphi 0, %s72
    $region4: #{combined_loss.1} parent=1 // loop_header_branch
      %12 = sbr.rel (%p10) target = $region8
    $region5: #{combined_loss.1} parent=1 // loop_body
      %s14 = ssub.s32 %s9, 1
      %s15 = ssub.s32 %s9, 2
      %s16 = sadd.s32 %s9, 1
      %s17 = ssub.s32 %s9, %s16
      %p18 = scmp.eq.s32.totalorder %s17, 0
      %s20 = sadd.s32 %s19, 1
      %s21 = scalar_select %p18, %s19, %s20
      %p24 = pneg %p18
      %p25 = scmp.eq.s32.totalorder %s9, 5
      %p26 = por %p24, %p25
      %p27 = scmp.ne.s32.totalorder %s19, %s22
      %p28 = scmp.eq.s32.totalorder %s9, 0
      %p29 = por %p27, %p28
      %p30 = scmp.ne.s32.totalorder %s19, %s22
      %p31 = scmp.eq.s32.totalorder %s14, 5
      %p32 = por %p30, %p31
      %p33 = scmp.ne.s32.totalorder %s22, %s23
      %p34 = scmp.eq.s32.totalorder %s14, 0
      %p35 = por %p33, %p34
      %p36 = scmp.ne.s32.totalorder %s22, %s23
      %p37 = scmp.eq.s32.totalorder %s15, 5
      %p38 = por %p36, %p37
      %p40 = scmp.ne.s32.totalorder %s23, %s39
      %p41 = scmp.eq.s32.totalorder %s15, 0
      %p42 = por %p40, %p41
      %s43 = ssub.s32 %s9, %s16
      %p44 = scmp.eq.s32.totalorder %s43, 0
      %s46 = sadd.s32 %s45, 1
      %s47 = scalar_select %p44, %s45, %s46
      %p50 = pneg %p44
      %p51 = scmp.eq.s32.totalorder %s9, 5
      %p52 = por %p50, %p51
      %p53 = scmp.ne.s32.totalorder %s45, %s48
      %p54 = scmp.eq.s32.totalorder %s9, 0
      %p55 = por %p53, %p54
      %p56 = scmp.ne.s32.totalorder %s45, %s48
      %p57 = scmp.eq.s32.totalorder %s14, 5
      %p58 = por %p56, %p57
      %p59 = scmp.ne.s32.totalorder %s48, %s49
      %p60 = scmp.eq.s32.totalorder %s14, 0
      %p61 = por %p59, %p60
      %p62 = scmp.ne.s32.totalorder %s48, %s49
      %p63 = scmp.eq.s32.totalorder %s15, 5
      %p64 = por %p62, %p63
      %p66 = scmp.ne.s32.totalorder %s49, %s65
      %p67 = scmp.eq.s32.totalorder %s15, 0
      %p68 = por %p66, %p67
      %s70 = sadd.s32 %s69, 1
      %p73 = scmp.eq.s32.totalorder %s9, 5
      %p74 = scmp.ne.s32.totalorder %s69, %s71
      %p75 = scmp.eq.s32.totalorder %s9, 0
      %p76 = por %p74, %p75
      %p77 = scmp.ne.s32.totalorder %s69, %s71
      %p78 = scmp.eq.s32.totalorder %s14, 5
      %p79 = por %p77, %p78
      %p80 = scmp.ne.s32.totalorder %s71, %s72
      %p81 = scmp.eq.s32.totalorder %s14, 0
      %p82 = por %p80, %p81
      %p83 = scmp.ne.s32.totalorder %s71, %s72
      %p84 = scmp.eq.s32.totalorder %s15, 5
      %p85 = por %p83, %p84
      %p87 = scmp.ne.s32.totalorder %s72, %s86
      %p88 = scmp.eq.s32.totalorder %s15, 0
      %p89 = por %p87, %p88
      %p90 = scmp.le.s32.totalorder 1, %s9
      %p91 = scmp.lt.s32.totalorder %s9, 7
      %p92 = pnand %p90, %p91
      %p93 = pneg %p92
      // Predicated region
      $region9: #{combined_loss.1} parent=5 // pred_check
        _
      $region10: #{combined_loss.1} parent=5 // pred_check_branch
        %95 = sbr.rel (%p92) target = $region12
      $region11: #{combined_loss.1} parent=5 // pred_region
        %s96 = ssub.s32 %s9, 1
      $region12: #{combined_loss.1} parent=5 // pred_fallthru
        _
      %p97 = scmp.lt.s32.totalorder %s9, 6
      // Predicated region
      $region13: #{combined_loss.1} parent=5 // pred_check
        %p98 = pneg %p97
      $region14: #{combined_loss.1} parent=5 // pred_check_branch
        %100 = sbr.rel (%p98) target = $region16
      $region15: #{combined_loss.1} parent=5 // pred_region
        // Predicated region
        $region17: #{combined_loss.1} parent=15 // pred_check
          %p101 = pneg %p29
        $region18: #{combined_loss.1} parent=15 // pred_check_branch
          %103 = sbr.rel (%p101) target = $region20
        $region19: #{combined_loss.1} parent=15 // pred_region
          %p104 = scmp.lt.s32.totalorder %s9, 5
          %s105 = scalar_select %p104, %s9, 5
          %s106 = smul.addr %s105, 3
          %s107 = smul.addr %s106, 8
          %s108 = scalar_lea.vmem %s0, %s107
        $region20: #{combined_loss.1} parent=15 // pred_fallthru
          _
        // Predicated region
        $region21: #{combined_loss.1} parent=15 // pred_check
          %p109 = pneg %p55
        $region22: #{combined_loss.1} parent=15 // pred_check_branch
          %111 = sbr.rel (%p109) target = $region24
        $region23: #{combined_loss.1} parent=15 // pred_region
          %p112 = scmp.lt.s32.totalorder %s9, 5
          %s113 = scalar_select %p112, %s9, 5
          %s114 = smul.addr %s113, 3
          %s115 = smul.addr %s114, 8
          %s116 = scalar_lea.vmem %s1, %s115
        $region24: #{combined_loss.1} parent=15 // pred_fallthru
          _
      $region16: #{combined_loss.1} parent=5 // pred_fallthru
        _
      %p117 = scmp.le.s32.totalorder 1, %s9
      %p118 = scmp.lt.s32.totalorder %s9, 7
      %p119 = pnand %p117, %p118
      %p120 = pneg %p119
      // Predicated region
      $region25: #{combined_loss.1} parent=5 // pred_check
        _
      $region26: #{combined_loss.1} parent=5 // pred_check_branch
        %122 = sbr.rel (%p119) target = $region28
      $region27: #{combined_loss.1} parent=5 // pred_region
        %s123 = ssub.s32 %s9, 1
        %p124 = scmp.lt.s32.totalorder %s14, 5
        %s125 = scalar_select %p124, %s14, 5
        %s126 = smul.addr %s125, 3
        %s127 = smul.addr %s126, 8
        %s128 = scalar_lea.vmem %s0, %s127
        %p129 = pneg %p35
        %p130 = pneg %p32
        %p131 = scmp.lt.s32.totalorder %s14, 5
        %s132 = scalar_select %p131, %s14, 5
        %s133 = smul.addr %s132, 3
        %s134 = smul.addr %s133, 8
        %s135 = scalar_lea.vmem %s1, %s134
        %p136 = pneg %p61
        %p137 = pneg %p58
        %p138 = pneg %p82
        %p139 = pneg %p79
        %p140 = scmp.lt.s32.totalorder %s14, 5
        %s141 = scalar_select %p140, %s14, 5
        %s142 = smul.addr %s141, 3
        %s143 = smul.addr %s142, 8
        %s144 = scalar_lea.vmem %s0, %s143
        %p145 = scmp.lt.s32.totalorder %s14, 5
        %s146 = scalar_select %p145, %s14, 5
        %s147 = smul.addr %s146, 3
        %s148 = smul.addr %s147, 8
        %s149 = scalar_lea.vmem %s1, %s148
        %p150 = scmp.eq.s32.totalorder %s14, 0
        // Predicated region
        $region29: #{combined_loss.1} parent=27 // pred_check
          %p151 = pneg %p150
        $region30: #{combined_loss.1} parent=27 // pred_check_branch
          %153 = sbr.rel (%p151) target = $region32
        $region31: #{combined_loss.1} parent=27 // pred_region
          %s154 = scalar_lea.smem [#allocation2], 0
          %155 = sst [smem:[%s154]] 0.0
        $region32: #{combined_loss.1} parent=27 // pred_fallthru
          _
        %v156 = vld [vmem:[%s144] sm:$0xff]
        %v157 = vld [vmem:[%s144 + $0x8] sm:$0xff]
        %v158 = vld [vmem:[%s144 + $0x10] sm:$0x3]
        %v159 = vld [vmem:[%s149] sm:$0xff]
        %v160 = vld [vmem:[%s149 + $0x8] sm:$0xff]
        %v161 = vld [vmem:[%s149 + $0x10] sm:$0x3]
        %v162 = vsub.f32 %v156, %v159
        %v163 = vsub.f32 %v157, %v160
        %v164 = vsub.f32 %v158, %v161
        %v165 = vand.u32 2147483647, %v162
        %v166 = vand.u32 2147483647, %v163
        %v167 = vand.u32 2147483647, %v164
        %vm168 = vcmask 146432
        %v169 = vsel %vm168, %v165, 0.0
        %v170 = vsel %vm168, %v166, 0.0
        %v171 = vadd.f32 %v169, %v170
        %vm172 = vcmask 140288
        %v173 = vsel %vm172, %v167, 0.0
        %v174 = vadd.f32 %v171, %v173
        %175 = vadd.xlane.f32.xlu0 %v174
        %v176 = vpop.xlane.xlu0 %175
        %v177 = vrot.slane %v176, 4
        %v178 = vadd.f32 %v176, %v177
        %v179 = vrot.slane %v178, 2
        %v180 = vadd.f32 %v178, %v179
        %v181 = vrot.slane %v180, 1
        %v182 = vadd.f32 %v180, %v181
        %s183 = vtos %v182
        %186 = vrot.lane.b32.xlu0 %v156, 2
        %v187 = vpop.permute.xlu0 %186
        %188 = vrot.lane.b32.xlu0 %v157, 2
        %v189 = vpop.permute.xlu0 %188
        %v192 = vsub.f32 %v156, %v187
        %v193 = vsub.f32 %v157, %v189
        %195 = vrot.lane.b32.xlu0 %v158, 2
        %v196 = vpop.permute.xlu0 %195
        %v198 = vsub.f32 %v158, %v196
        %v199 = vmul.f32 %v192, 2.0
        %v200 = vmul.f32 %v193, 2.0
        %v201 = vmul.f32 %v198, 2.0
        %vm205 = vcmask 1046528
        %v206 = vrot.slane %v199, 1
        %v207 = vrot.slane %v200, 1
        %v208 = vsel %vm205, %v206, %v207
        %v209 = vrot.slane %v201, 1
        %v210 = vsel %vm205, %v207, %v209
        %v213 = vadd.f32 %v192, %v208
        %v214 = vadd.f32 %v193, %v210
        %vm218 = vcmask 1045504
        %v219 = vrot.slane %v192, 2
        %v220 = vrot.slane %v193, 2
        %v221 = vsel %vm218, %v219, %v220
        %v222 = vrot.slane %v198, 2
        %v223 = vsel %vm218, %v220, %v222
        %v226 = vadd.f32 %v213, %v221
        %v227 = vadd.f32 %v214, %v223
        %vm228 = vcmask 1041408
        %v229 = vrot.slane %v156, 6
        %v230 = vrot.slane %v157, 6
        %v231 = vsel %vm228, %v229, %v230
        %v235 = vsub.f32 %v156, %v229
        %v236 = vsub.f32 %v157, %v231
        %v237 = vsub.f32 %v158, %v230
        %v238 = vmul.f32 %v235, 2.0
        %v239 = vmul.f32 %v236, 2.0
        %v240 = vmul.f32 %v237, 2.0
        %244 = vrot.lane.b32.xlu0 %v238, 127
        %v245 = vpop.permute.xlu0 %244
        %246 = vrot.lane.b32.xlu0 %v239, 127
        %v247 = vpop.permute.xlu0 %246
        %248 = vrot.lane.b32.xlu0 %v240, 127
        %v249 = vpop.permute.xlu0 %248
        %v253 = vadd.f32 %v235, %v245
        %v254 = vadd.f32 %v236, %v247
        %v255 = vadd.f32 %v237, %v249
        %259 = vrot.lane.b32.xlu0 %v235, 126
        %v260 = vpop.permute.xlu0 %259
        %261 = vrot.lane.b32.xlu0 %v236, 126
        %v262 = vpop.permute.xlu0 %261
        %263 = vrot.lane.b32.xlu0 %v237, 126
        %v264 = vpop.permute.xlu0 %263
        %v268 = vadd.f32 %v253, %v260
        %v269 = vadd.f32 %v254, %v262
        %v270 = vadd.f32 %v255, %v264
        %v271 = vmul.f32 %v226, %v226
        %v272 = vmul.f32 %v227, %v227
        %v273 = vmul.f32 %v268, %v268
        %v274 = vmul.f32 %v269, %v269
        %v275 = vmul.f32 %v270, %v270
        %v279 = vrot.slane %v273, 2
        %v280 = vrot.slane %v274, 2
        %v281 = vsel %vm218, %v279, %v280
        %v282 = vrot.slane %v275, 2
        %v283 = vsel %vm218, %v280, %v282
        %284 = vrot.lane.b32.xlu0 %v281, 2
        %v285 = vpop.permute.xlu0 %284
        %286 = vrot.lane.b32.xlu0 %v283, 2
        %v287 = vpop.permute.xlu0 %286
        %v290 = vadd.f32 %v271, %v285
        %v291 = vadd.f32 %v272, %v287
        %v292 = vadd.f32 %v290, 1e-06
        %v293 = vadd.f32 %v291, 1e-06
        %v294 = vrsqrt.pop %v292
        %v295 = vmul.f32 %v294, %v292
        %v296 = vmul.f32 %v295, %v294
        %v297 = vmul.f32 0.5, %v296
        %v298 = vsub.f32 1.5, %v297
        %v299 = vmul.f32 %v294, %v298
        %v300 = vmul.f32 %v292, %v299
        %vm301 = vcmp.eq.f32.partialorder %v292, inf
        %v302 = vsel %vm301, %v292, %v300
        %vm303 = vcmp.eq.f32.partialorder %v292, 0.0
        %v304 = vand.u32 %v292, 2147483648
        %v305 = vsel %vm303, %v304, %v302
        %v306 = vrsqrt.pop %v293
        %v307 = vmul.f32 %v306, %v293
        %v308 = vmul.f32 %v307, %v306
        %v309 = vmul.f32 0.5, %v308
        %v310 = vsub.f32 1.5, %v309
        %v311 = vmul.f32 %v306, %v310
        %v312 = vmul.f32 %v293, %v311
        %vm313 = vcmp.eq.f32.partialorder %v293, inf
        %v314 = vsel %vm313, %v293, %v312
        %vm315 = vcmp.eq.f32.partialorder %v293, 0.0
        %v316 = vand.u32 %v293, 2147483648
        %v317 = vsel %vm315, %v316, %v314
        %320 = vrot.lane.b32.xlu0 %v159, 2
        %v321 = vpop.permute.xlu0 %320
        %322 = vrot.lane.b32.xlu0 %v160, 2
        %v323 = vpop.permute.xlu0 %322
        %v326 = vsub.f32 %v159, %v321
        %v327 = vsub.f32 %v160, %v323
        %329 = vrot.lane.b32.xlu0 %v161, 2
        %v330 = vpop.permute.xlu0 %329
        %v332 = vsub.f32 %v161, %v330
        %v333 = vmul.f32 %v326, 2.0
        %v334 = vmul.f32 %v327, 2.0
        %v335 = vmul.f32 %v332, 2.0
        %v339 = vrot.slane %v333, 1
        %v340 = vrot.slane %v334, 1
        %v341 = vsel %vm205, %v339, %v340
        %v342 = vrot.slane %v335, 1
        %v343 = vsel %vm205, %v340, %v342
        %v346 = vadd.f32 %v326, %v341
        %v347 = vadd.f32 %v327, %v343
        %v351 = vrot.slane %v326, 2
        %v352 = vrot.slane %v327, 2
        %v353 = vsel %vm218, %v351, %v352
        %v354 = vrot.slane %v332, 2
        %v355 = vsel %vm218, %v352, %v354
        %v358 = vadd.f32 %v346, %v353
        %v359 = vadd.f32 %v347, %v355
        %v360 = vrot.slane %v159, 6
        %v361 = vrot.slane %v160, 6
        %v362 = vsel %vm228, %v360, %v361
        %v366 = vsub.f32 %v159, %v360
        %v367 = vsub.f32 %v160, %v362
        %v368 = vsub.f32 %v161, %v361
        %v369 = vmul.f32 %v366, 2.0
        %v370 = vmul.f32 %v367, 2.0
        %v371 = vmul.f32 %v368, 2.0
        %375 = vrot.lane.b32.xlu0 %v369, 127
        %v376 = vpop.permute.xlu0 %375
        %377 = vrot.lane.b32.xlu0 %v370, 127
        %v378 = vpop.permute.xlu0 %377
        %379 = vrot.lane.b32.xlu0 %v371, 127
        %v380 = vpop.permute.xlu0 %379
        %v384 = vadd.f32 %v366, %v376
        %v385 = vadd.f32 %v367, %v378
        %v386 = vadd.f32 %v368, %v380
        %390 = vrot.lane.b32.xlu0 %v366, 126
        %v391 = vpop.permute.xlu0 %390
        %392 = vrot.lane.b32.xlu0 %v367, 126
        %v393 = vpop.permute.xlu0 %392
        %394 = vrot.lane.b32.xlu0 %v368, 126
        %v395 = vpop.permute.xlu0 %394
        %v399 = vadd.f32 %v384, %v391
        %v400 = vadd.f32 %v385, %v393
        %v401 = vadd.f32 %v386, %v395
        %v402 = vmul.f32 %v358, %v358
        %v403 = vmul.f32 %v359, %v359
        %v404 = vmul.f32 %v399, %v399
        %v405 = vmul.f32 %v400, %v400
        %v406 = vmul.f32 %v401, %v401
        %v410 = vrot.slane %v404, 2
        %v411 = vrot.slane %v405, 2
        %v412 = vsel %vm218, %v410, %v411
        %v413 = vrot.slane %v406, 2
        %v414 = vsel %vm218, %v411, %v413
        %415 = vrot.lane.b32.xlu0 %v412, 2
        %v416 = vpop.permute.xlu0 %415
        %417 = vrot.lane.b32.xlu0 %v414, 2
        %v418 = vpop.permute.xlu0 %417
        %v421 = vadd.f32 %v402, %v416
        %v422 = vadd.f32 %v403, %v418
        %v423 = vadd.f32 %v421, 1e-06
        %v424 = vadd.f32 %v422, 1e-06
        %v425 = vrsqrt.pop %v423
        %v426 = vmul.f32 %v425, %v423
        %v427 = vmul.f32 %v426, %v425
        %v428 = vmul.f32 0.5, %v427
        %v429 = vsub.f32 1.5, %v428
        %v430 = vmul.f32 %v425, %v429
        %v431 = vmul.f32 %v423, %v430
        %vm432 = vcmp.eq.f32.partialorder %v423, inf
        %v433 = vsel %vm432, %v423, %v431
        %vm434 = vcmp.eq.f32.partialorder %v423, 0.0
        %v435 = vand.u32 %v423, 2147483648
        %v436 = vsel %vm434, %v435, %v433
        %v437 = vrsqrt.pop %v424
        %v438 = vmul.f32 %v437, %v424
        %v439 = vmul.f32 %v438, %v437
        %v440 = vmul.f32 0.5, %v439
        %v441 = vsub.f32 1.5, %v440
        %v442 = vmul.f32 %v437, %v441
        %v443 = vmul.f32 %v424, %v442
        %vm444 = vcmp.eq.f32.partialorder %v424, inf
        %v445 = vsel %vm444, %v424, %v443
        %vm446 = vcmp.eq.f32.partialorder %v424, 0.0
        %v447 = vand.u32 %v424, 2147483648
        %v448 = vsel %vm446, %v447, %v445
        %v449 = vsub.f32 %v305, %v436
        %v450 = vsub.f32 %v317, %v448
        %v451 = vand.u32 2147483647, %v449
        %v452 = vand.u32 2147483647, %v450
        %455 = vrot.lane.b32.xlu0 %v451, 126
        %v456 = vpop.permute.xlu0 %455
        %457 = vrot.lane.b32.xlu0 %v452, 126
        %v458 = vpop.permute.xlu0 %457
        %vm461 = vcmask 130048
        %v462 = vsel %vm461, %v456, 0.0
        %v463 = vsel %vm461, %v458, 0.0
        %v464 = vadd.f32 %v462, %v463
        %465 = vadd.xlane.f32.xlu0 %v464
        %v466 = vpop.xlane.xlu0 %465
        %v467 = vrot.slane %v466, 4
        %v468 = vadd.f32 %v466, %v467
        %v469 = vrot.slane %v468, 2
        %v470 = vadd.f32 %v468, %v469
        %v471 = vrot.slane %v470, 1
        %v472 = vadd.f32 %v470, %v471
        %s473 = vtos %v472
        %s474 = sld [smem:[#allocation2]]
        %s475 = smul.f32 %s473, 0.5
        %s476 = sadd.f32 %s183, %s475
        %s477 = sadd.f32 %s474, %s476
        %s478 = scalar_lea.smem [#allocation2], 0
        %479 = sst [smem:[%s478]] %s477
        %p480 = scmp.eq.s32.totalorder %s14, 5
        // Predicated region
        $region33: #{combined_loss.1} parent=27 // pred_check
          %p481 = pneg %p480
        $region34: #{combined_loss.1} parent=27 // pred_check_branch
          %483 = sbr.rel (%p481) target = $region36
        $region35: #{combined_loss.1} parent=27 // pred_region
          %s484 = sld [smem:[#allocation2]]
          %s485 = smul.f32 %s484, 0.0006510417
          %s486 = scalar_lea.smem [#allocation3], 0
          %487 = sst [smem:[%s486]] %s485
        $region36: #{combined_loss.1} parent=27 // pred_fallthru
          _
        // Predicated region
        $region37: #{combined_loss.1} parent=27 // pred_check
          %p488 = pneg %p79
        $region38: #{combined_loss.1} parent=27 // pred_check_branch
          %490 = sbr.rel (%p488) target = $region40
        $region39: #{combined_loss.1} parent=27 // pred_region
          %492 = vsyncadd [#allocation4], 0
          %s494 = sshll.u32 %s2, 4
          %s495 = int_to_ptr.hbm [resolvable:$true] %s494
          %497 = dma.smem_to_hbm [#allocation3], 16, %s495, [#allocation4]
        $region40: #{combined_loss.1} parent=27 // pred_fallthru
          _
        // Predicated region
        $region41: #{combined_loss.1} parent=27 // pred_check
          %p498 = pneg %p79
        $region42: #{combined_loss.1} parent=27 // pred_check_branch
          %500 = sbr.rel (%p498) target = $region44
        $region43: #{combined_loss.1} parent=27 // pred_region
          %502 = dma.done [#allocation4], 16
        $region44: #{combined_loss.1} parent=27 // pred_fallthru
          _
        %503 = sfence
      $region28: #{combined_loss.1} parent=5 // pred_fallthru
        _
      %p504 = scmp.le.s32.totalorder 2, %s9
      // Predicated region
      $region45: #{combined_loss.1} parent=5 // pred_check
        %p505 = pneg %p504
      $region46: #{combined_loss.1} parent=5 // pred_check_branch
        %507 = sbr.rel (%p505) target = $region48
      $region47: #{combined_loss.1} parent=5 // pred_region
        %s508 = ssub.s32 %s9, 2
      $region48: #{combined_loss.1} parent=5 // pred_fallthru
        _
    $region6: #{combined_loss.1} parent=1 // loop_footer
      %s13 = sadd.s32 1, %s9
    $region7: #{combined_loss.1} parent=1 // loop_footer_branch
      %8 = sbr.rel target = $region3
    $region8: #{combined_loss.1} parent=1 // loop_exit
      _
    %509 = vsyncpa [#allocation4], 1
    %s510 = scalar_lea.sflag [#allocation4], 1
    %511 = vsyncpa %s510, 1

</llo_original>
